<compile_context>
chip_gen: v6e
topology: v6e:2x2x1
jax: 0.10.0
libtpu: 0.0.40
codegen_flags: <defaults>
</compile_context>

<pallas_src>
import functools

import jax
import jax.numpy as jnp
from jax import lax
from jax.experimental import pallas as pl
from jax.experimental.pallas import tpu as pltpu


# ---------------------------------------------------------------------------
# Kernel
# ---------------------------------------------------------------------------
def aster_block_kernel(wcol_ref, x_main_ref, x_prev_ref, x_next_ref,
                       w1_ref, b1_ref, w2_ref, b2_ref, out_ref,
                       *, W, PADL, HALO):
    """One grid step = one (batch element, row-tile) pair.

    wcol_ref  : (1, OUTW)  int32   column index (p % W) per output lane
    x_main_ref: (1, C, OUTW) f32   this row-tile of x (also the residual)
    x_prev_ref: (1, C, HALO) f32   slab ending just above this tile (clamped)
    x_next_ref: (1, C, HALO) f32   slab starting just below this tile (clamped)
    w1_ref    : (C, C)     bf16    1x1 conv weight with BN1 scale folded in
    b1_ref    : (C, 1)     f32     folded BN1 bias
    w2_ref    : (C, 9*C)   bf16    3x3 conv weight, taps along K, BN2 folded
    b2_ref    : (C, 1)     f32     folded BN2 bias
    out_ref   : (1, C, OUTW)       output row-tile (lane-dense store)
    """
    i = pl.program_id(1)
    n_i = pl.num_programs(1)
    OUTW = out_ref.shape[-1]

    w1 = w1_ref[...]                     # (C, C) bf16
    b1 = b1_ref[...]                     # (C, 1) f32

    # ---- conv1 (1x1) + folded BN1 + ReLU on the main slab (N = OUTW) ----
    xm = x_main_ref[0]                                           # (C, OUTW) f32
    y1m = jnp.dot(w1, xm.astype(jnp.bfloat16),
                  preferred_element_type=jnp.float32)
    y1m = jnp.maximum(y1m + b1, 0.0).astype(jnp.bfloat16)

    # ---- conv1 on the two small row-halos (N = PADL each).  conv2's zero
    # padding pads the *activation*, so at the image top/bottom the halo
    # activation is zeroed (the clamped halo DMA content is then irrelevant).
    xl = x_prev_ref[0][:, HALO - PADL:]                          # aligned slice
    y1l = jnp.dot(w1, xl.astype(jnp.bfloat16),
                  preferred_element_type=jnp.float32)
    y1l = jnp.maximum(y1l + b1, 0.0)
    y1l = jnp.where(i > 0, y1l, 0.0).astype(jnp.bfloat16)        # (C, PADL)

    xr = x_next_ref[0][:, :PADL]
    y1r = jnp.dot(w1, xr.astype(jnp.bfloat16),
                  preferred_element_type=jnp.float32)
    y1r = jnp.maximum(y1r + b1, 0.0)
    y1r = jnp.where(i < n_i - 1, y1r, 0.0).astype(jnp.bfloat16)  # (C, PADL)

    # Contiguous conv1-activation window; all pieces are lane-aligned
    # (multiples of 128) so the concat is tile-aligned.
    y1 = jnp.concatenate([y1l, y1m, y1r], axis=-1)   # (C, OUTW + 2*PADL) bf16

    # ---- conv2 (3x3, pad 1): stack the 9 shifted taps along the contraction
    # axis and do ONE matmul with K = 9*C.  Output flat position p needs the
    # window element at PADL + p + oh*W + ow; left/right image edges are
    # masked per tap (no mod: wcol is precomputed).
    wcol = wcol_ref[...]                             # (1, OUTW) int32
    mask_l = wcol >= 1                               # source col w-1 valid
    mask_r = wcol <= W - 2                           # source col w+1 valid

    taps = []
    for oh in (-1, 0, 1):
        for ow in (-1, 0, 1):
            s = PADL + oh * W + ow
            tap = y1[:, s:s + OUTW]                  # (C, OUTW) bf16
            if ow == -1:
                tap = jnp.where(mask_l, tap, jnp.zeros_like(tap))
            elif ow == 1:
                tap = jnp.where(mask_r, tap, jnp.zeros_like(tap))
            taps.append(tap)
    stacked = jnp.concatenate(taps, axis=0)          # (9*C, OUTW) bf16

    acc = jnp.dot(w2_ref[...], stacked,
                  preferred_element_type=jnp.float32)            # (C, OUTW)

    # ---- folded BN2 bias + residual (exact f32, aligned) + ReLU, lane-dense
    out = jnp.maximum(acc + b2_ref[...] + xm, 0.0)
    out_ref[0] = out.astype(out_ref.dtype)


# ---------------------------------------------------------------------------
# Tiling helpers
# ---------------------------------------------------------------------------
def _pad_lanes(n):
    return -(-n // 128) * 128


def _halo_width(outw, padl):
    """Smallest multiple of 128 that divides OUTW and is >= PADL (else None)."""
    m = padl
    while m <= outw:
        if outw % m == 0:
            return m
        m += 128
    return None


def _pick_row_tile(H, W, C, max_rows=None, budget_bytes=24 << 20):
    """Largest row tile TH | H with TH*W % 128 == 0 that fits the VMEM budget.

    Prefers TH*W % 256 == 0 (fills the 2x256x256 MXU on v6e/v7x). Raises if no
    valid tile exists (instead of silently violating the (8,128) rule).
    """
    padl = _pad_lanes(W + 1)
    cap = H if max_rows is None else min(H, max_rows)
    cands = []
    for th in range(1, cap + 1):
        if H % th:
            continue
        outw = th * W
        if outw % 128 or outw < padl or _halo_width(outw, padl) is None:
            continue
        cands.append(th)
    if not cands:
        raise NotImplementedError(
            f"AsterBlock Pallas kernel needs TH | H with TH*W % 128 == 0 "
            f"(H={H}, W={W}); pad the spatial dims in the caller.")
    # Rough per-step VMEM working set: ~48 bytes per (channel, output lane)
    # (I/O double buffers + bf16 tap stack + f32 accumulator).
    fitting = [th for th in cands if 48 * C * th * W <= budget_bytes] or [cands[0]]
    pref = [th for th in fitting if (th * W) % 256 == 0]
    return max(pref or fitting)


# ---------------------------------------------------------------------------
# Wrapper
# ---------------------------------------------------------------------------
def aster_block_pallas(x_nchw, w1f, b1, w2f, b2, *, max_rows_per_tile=None,
                       vmem_budget_bytes=24 << 20, out_dtype=jnp.float32):
    """x_nchw: (B, C, H, W) float32 (PyTorch layout). Returns (B, C, H, W)."""
    B, C, H, W = x_nchw.shape
    assert w1f.shape == (C, C), "Identity downsample requires inplanes == planes"
    assert w2f.shape == (C, 9 * C)
    assert b1.shape == (C, 1) and b2.shape == (C, 1)

    TH = _pick_row_tile(H, W, C, max_rows_per_tile, vmem_budget_bytes)
    n_h = H // TH
    OUTW = TH * W
    PADL = _pad_lanes(W + 1)
    HALO = _halo_width(OUTW, PADL)
    R = OUTW // HALO
    NBLK = (H * W) // HALO

    x_flat = x_nchw.reshape(B, C, H * W)           # pure reshape, no copy/pad
    wcol = (jnp.arange(OUTW, dtype=jnp.int32) % W).reshape(1, OUTW)

    kernel = functools.partial(aster_block_kernel, W=W, PADL=PADL, HALO=HALO)

    out_flat = pl.pallas_call(
        kernel,
        out_shape=jax.ShapeDtypeStruct((B, C, H * W), out_dtype),
        grid_spec=pltpu.PrefetchScalarGridSpec(
            num_scalar_prefetch=0,
            grid=(B, n_h),
            in_specs=[
                # column-index row (constant across the grid, stays resident)
                pl.BlockSpec((1, OUTW), lambda b, i: (0, 0)),
                # main slab of x: rows [i*TH, (i+1)*TH) -- read exactly once
                pl.BlockSpec((1, C, OUTW), lambda b, i: (b, 0, i)),
                # small top halo (tail of the previous slab), clamped at i==0
                pl.BlockSpec((1, C, HALO),
                             lambda b, i: (b, 0, jnp.maximum(i * R - 1, 0))),
                # small bottom halo (head of the next slab), clamped at i==last
                pl.BlockSpec((1, C, HALO),
                             lambda b, i: (b, 0, jnp.minimum((i + 1) * R, NBLK - 1))),
                pl.BlockSpec((C, C), lambda b, i: (0, 0)),          # w1 (BN1 folded)
                pl.BlockSpec((C, 1), lambda b, i: (0, 0)),          # b1
                pl.BlockSpec((C, 9 * C), lambda b, i: (0, 0)),      # w2 (BN2 folded)
                pl.BlockSpec((C, 1), lambda b, i: (0, 0)),          # b2
            ],
            out_specs=pl.BlockSpec((1, C, OUTW), lambda b, i: (b, 0, i)),
        ),
        compiler_params=pltpu.CompilerParams(
            dimension_semantics=("parallel", "parallel"),
            vmem_limit_bytes=64 * 1024 * 1024),
    )(wcol, x_flat, x_flat, x_flat, w1f, b1, w2f, b2)

    return out_flat.reshape(B, C, H, W)


# ---------------------------------------------------------------------------
# Parameter packing: fold eval-mode BN into conv weights / biases
# ---------------------------------------------------------------------------
def pack_aster_block_params(w1_oihw, bn1, w2_oihw, bn2, eps=1e-5):
    g1, be1, m1, v1 = bn1
    g2, be2, m2, v2 = bn2
    O, I = w1_oihw.shape[0], w1_oihw.shape[1]
    s1 = g1 / jnp.sqrt(v1 + eps)
    s2 = g2 / jnp.sqrt(v2 + eps)
    # 1x1 conv: (O,I,1,1) -> (O,I), BN1 scale folded, bf16 MXU operand.
    w1f = (w1_oihw[:, :, 0, 0] * s1[:, None]).astype(jnp.bfloat16)
    b1 = (be1 - m1 * s1).reshape(O, 1).astype(jnp.float32)
    # 3x3 conv: (O,I,3,3) -> tap-major (9,O,I), BN2 scale folded, then taps
    # laid along the contraction axis -> (O, 9*I) for the single K=9C matmul.
    I2 = w2_oihw.shape[1]
    w2t = jnp.transpose(w2_oihw, (2, 3, 0, 1)).reshape(9, O, I2)
    w2t = w2t * s2[None, :, None]
    w2f = jnp.transpose(w2t, (1, 0, 2)).reshape(O, 9 * I2).astype(jnp.bfloat16)
    b2 = (be2 - m2 * s2).reshape(O, 1).astype(jnp.float32)
    return w1f, b1, w2f, b2


# ---------------------------------------------------------------------------
# Pure-JAX reference (NCHW, mirrors the PyTorch module in eval mode)
# ---------------------------------------------------------------------------
def _bn_eval(y, gamma, beta, mean, var, eps=1e-5):
    inv = gamma / jnp.sqrt(var + eps)
    return (y - mean[None, :, None, None]) * inv[None, :, None, None] \
        + beta[None, :, None, None]


def aster_block_reference(x, w1_oihw, bn1, w2_oihw, bn2):
    dn = ("NCHW", "OIHW", "NCHW")
    y = lax.conv_general_dilated(x, w1_oihw, (1, 1), "VALID",
                                 dimension_numbers=dn, precision="highest")
    y = jnp.maximum(_bn_eval(y, *bn1), 0.0)
    y = lax.conv_general_dilated(y, w2_oihw, (1, 1), ((1, 1), (1, 1)),
                                 dimension_numbers=dn, precision="highest")
    y = _bn_eval(y, *bn2)
    return jnp.maximum(y + x, 0.0)


if __name__ == "__main__":
    B, inplanes, planes, H, W = 2, 4, 4, 16, 16
    eps = 1e-5

    key = jax.random.PRNGKey(0)
    keys = jax.random.split(key, 11)

    x = jax.random.normal(keys[0], (B, inplanes, H, W), jnp.float32)

    w1_oihw = 0.1 * jax.random.normal(keys[1], (planes, inplanes, 1, 1), jnp.float32)
    w2_oihw = 0.1 * jax.random.normal(keys[2], (planes, planes, 3, 3), jnp.float32)

    g1 = jax.random.uniform(keys[3], (planes,), jnp.float32, 0.5, 1.5)
    be1 = 0.1 * jax.random.normal(keys[4], (planes,), jnp.float32)
    m1 = 0.1 * jax.random.normal(keys[5], (planes,), jnp.float32)
    v1 = jax.random.uniform(keys[6], (planes,), jnp.float32, 0.5, 1.5)
    g2 = jax.random.uniform(keys[7], (planes,), jnp.float32, 0.5, 1.5)
    be2 = 0.1 * jax.random.normal(keys[8], (planes,), jnp.float32)
    m2 = 0.1 * jax.random.normal(keys[9], (planes,), jnp.float32)
    v2 = jax.random.uniform(keys[10], (planes,), jnp.float32, 0.5, 1.5)

    bn1 = (g1, be1, m1, v1)
    bn2 = (g2, be2, m2, v2)
    w1f, b1, w2f, b2 = pack_aster_block_params(w1_oihw, bn1, w2_oihw, bn2, eps)

    ref = aster_block_reference(x, w1_oihw, bn1, w2_oihw, bn2)

    run = jax.jit(aster_block_pallas,
                  static_argnames=("max_rows_per_tile", "vmem_budget_bytes",
                                   "out_dtype"))

    # 1) Default tiling: largest row tile (here the whole 16x16 image, n_h=1).
    out = jax.block_until_ready(run(x, w1f, b1, w2f, b2))
    assert out.shape == (B, planes, H, W)
    assert jnp.allclose(out, ref, rtol=2e-2, atol=2e-2), (
        float(jnp.max(jnp.abs(out - ref))))

    # 2) Forced multi-row-tile path (exercises the small-halo / clamped-index
    #    handling): TH=8 -> n_h=2.
    out2 = jax.block_until_ready(run(x, w1f, b1, w2f, b2, max_rows_per_tile=8))
    assert jnp.allclose(out2, ref, rtol=2e-2, atol=2e-2), (
        float(jnp.max(jnp.abs(out2 - ref))))

    print("KERNEL_OK")
</pallas_src>

<mosaic_0001>
module attributes {stable_mosaic.version = 11 : i64} {
  func.func @aster_block_kernel(%arg0: i32, %arg1: i32, %arg2: memref<1x256xi32, #tpu.memory_space<vmem>>, %arg3: memref<1x4x256xf32, #tpu.memory_space<vmem>>, %arg4: memref<1x4x128xf32, #tpu.memory_space<vmem>>, %arg5: memref<1x4x128xf32, #tpu.memory_space<vmem>>, %arg6: memref<4x4xbf16, #tpu.memory_space<vmem>>, %arg7: memref<4x1xf32, #tpu.memory_space<vmem>>, %arg8: memref<4x36xbf16, #tpu.memory_space<vmem>>, %arg9: memref<4x1xf32, #tpu.memory_space<vmem>>, %arg10: memref<1x4x256xf32, #tpu.memory_space<vmem>>) attributes {dimension_semantics = [#tpu.dimension_semantics<parallel>, #tpu.dimension_semantics<parallel>], iteration_bounds = array<i64: 2, 1>, scalar_prefetch = 0 : i64, scratch_operands = 0 : i64, tpu.core_type = #tpu.core_type<tc>, window_params = [{pipeline_mode = #tpu.pipeline_mode<synchronous>, transform_indices = @transform_0, window_bounds = array<i64: 1, 256>}, {transform_indices = @transform_1, window_bounds = array<i64: 1, 4, 256>}, {transform_indices = @transform_2, window_bounds = array<i64: 1, 4, 128>}, {transform_indices = @transform_3, window_bounds = array<i64: 1, 4, 128>}, {pipeline_mode = #tpu.pipeline_mode<synchronous>, transform_indices = @transform_4, window_bounds = array<i64: 4, 4>}, {pipeline_mode = #tpu.pipeline_mode<synchronous>, transform_indices = @transform_5, window_bounds = array<i64: 4, 1>}, {pipeline_mode = #tpu.pipeline_mode<synchronous>, transform_indices = @transform_6, window_bounds = array<i64: 4, 36>}, {pipeline_mode = #tpu.pipeline_mode<synchronous>, transform_indices = @transform_7, window_bounds = array<i64: 4, 1>}, {transform_indices = @transform_8, window_bounds = array<i64: 1, 4, 256>}]} {
    %c0 = arith.constant 0 : index
    %c0_0 = arith.constant 0 : index
    %0 = vector.load %arg6[%c0, %c0_0] : memref<4x4xbf16, #tpu.memory_space<vmem>>, vector<4x4xbf16>
    %c0_1 = arith.constant 0 : index
    %c0_2 = arith.constant 0 : index
    %1 = vector.load %arg7[%c0_1, %c0_2] : memref<4x1xf32, #tpu.memory_space<vmem>>, vector<4x1xf32>
    %c0_3 = arith.constant 0 : index
    %c0_4 = arith.constant 0 : index
    %c0_5 = arith.constant 0 : index
    %2 = vector.load %arg3[%c0_3, %c0_4, %c0_5] : memref<1x4x256xf32, #tpu.memory_space<vmem>>, vector<1x4x256xf32>
    %3 = vector.shape_cast %2 : vector<1x4x256xf32> to vector<4x256xf32>
    %4 = arith.truncf %3 : vector<4x256xf32> to vector<4x256xbf16>
    %cst = arith.constant dense<0.000000e+00> : vector<4x256xf32>
    %5 = tpu.matmul %0, %4, %cst {dimension_numbers = #tpu.dot_dimension_numbers<[1], [0], [0], [1], [0, 0, 1, 1], [], []>} : vector<4x4xbf16>, vector<4x256xbf16>, vector<4x256xf32> -> vector<4x256xf32>
    %6 = vector.broadcast %1 : vector<4x1xf32> to vector<4x256xf32>
    %7 = arith.addf %5, %6 : vector<4x256xf32>
    %cst_6 = arith.constant 0.000000e+00 : f32
    %8 = vector.broadcast %cst_6 : f32 to vector<4x256xf32>
    %9 = arith.maximumf %7, %8 : vector<4x256xf32>
    %10 = arith.truncf %9 : vector<4x256xf32> to vector<4x256xbf16>
    %c0_7 = arith.constant 0 : index
    %c0_8 = arith.constant 0 : index
    %c0_9 = arith.constant 0 : index
    %11 = vector.load %arg4[%c0_7, %c0_8, %c0_9] : memref<1x4x128xf32, #tpu.memory_space<vmem>>, vector<1x4x128xf32>
    %12 = vector.shape_cast %11 : vector<1x4x128xf32> to vector<4x128xf32>
    %13 = arith.truncf %12 : vector<4x128xf32> to vector<4x128xbf16>
    %cst_10 = arith.constant dense<0.000000e+00> : vector<4x128xf32>
    %14 = tpu.matmul %0, %13, %cst_10 {dimension_numbers = #tpu.dot_dimension_numbers<[1], [0], [0], [1], [0, 0, 1, 1], [], []>} : vector<4x4xbf16>, vector<4x128xbf16>, vector<4x128xf32> -> vector<4x128xf32>
    %15 = vector.broadcast %1 : vector<4x1xf32> to vector<4x128xf32>
    %16 = arith.addf %14, %15 : vector<4x128xf32>
    %cst_11 = arith.constant 0.000000e+00 : f32
    %17 = vector.broadcast %cst_11 : f32 to vector<4x128xf32>
    %18 = arith.maximumf %16, %17 : vector<4x128xf32>
    %c0_i32 = arith.constant 0 : i32
    %19 = arith.cmpi sgt, %arg1, %c0_i32 : i32
    %cst_12 = arith.constant 0.000000e+00 : f32
    %20 = vector.broadcast %cst_12 : f32 to vector<4x128xf32>
    %21 = arith.select %19, %18, %20 : vector<4x128xf32>
    %22 = arith.truncf %21 : vector<4x128xf32> to vector<4x128xbf16>
    %c0_13 = arith.constant 0 : index
    %c0_14 = arith.constant 0 : index
    %c0_15 = arith.constant 0 : index
    %23 = vector.load %arg5[%c0_13, %c0_14, %c0_15] : memref<1x4x128xf32, #tpu.memory_space<vmem>>, vector<1x4x128xf32>
    %24 = vector.shape_cast %23 : vector<1x4x128xf32> to vector<4x128xf32>
    %25 = arith.truncf %24 : vector<4x128xf32> to vector<4x128xbf16>
    %cst_16 = arith.constant dense<0.000000e+00> : vector<4x128xf32>
    %26 = tpu.matmul %0, %25, %cst_16 {dimension_numbers = #tpu.dot_dimension_numbers<[1], [0], [0], [1], [0, 0, 1, 1], [], []>} : vector<4x4xbf16>, vector<4x128xbf16>, vector<4x128xf32> -> vector<4x128xf32>
    %27 = vector.broadcast %1 : vector<4x1xf32> to vector<4x128xf32>
    %28 = arith.addf %26, %27 : vector<4x128xf32>
    %cst_17 = arith.constant 0.000000e+00 : f32
    %29 = vector.broadcast %cst_17 : f32 to vector<4x128xf32>
    %30 = arith.maximumf %28, %29 : vector<4x128xf32>
    %c0_i32_18 = arith.constant 0 : i32
    %31 = arith.cmpi slt, %arg1, %c0_i32_18 : i32
    %cst_19 = arith.constant 0.000000e+00 : f32
    %32 = vector.broadcast %cst_19 : f32 to vector<4x128xf32>
    %33 = arith.select %31, %30, %32 : vector<4x128xf32>
    %34 = arith.truncf %33 : vector<4x128xf32> to vector<4x128xbf16>
    %35 = tpu.concatenate %22, %10, %34 in 1 : vector<4x128xbf16>, vector<4x256xbf16>, vector<4x128xbf16> -> vector<4x512xbf16>
    %c0_20 = arith.constant 0 : index
    %c0_21 = arith.constant 0 : index
    %36 = vector.load %arg2[%c0_20, %c0_21] : memref<1x256xi32, #tpu.memory_space<vmem>>, vector<1x256xi32>
    %c1_i32 = arith.constant 1 : i32
    %37 = vector.broadcast %c1_i32 : i32 to vector<1x256xi32>
    %38 = arith.cmpi sge, %36, %37 : vector<1x256xi32>
    %c14_i32 = arith.constant 14 : i32
    %39 = vector.broadcast %c14_i32 : i32 to vector<1x256xi32>
    %40 = arith.cmpi sle, %36, %39 : vector<1x256xi32>
    %41 = vector.extract_strided_slice %35 {offsets = [0, 111], sizes = [4, 256], strides = [1, 1]} : vector<4x512xbf16> to vector<4x256xbf16>
    %cst_22 = arith.constant 0.000000e+00 : bf16
    %42 = vector.broadcast %cst_22 : bf16 to vector<4x256xbf16>
    %43 = vector.shape_cast %38 : vector<1x256xi1> to vector<1x256xi1>
    %44 = vector.broadcast %43 : vector<1x256xi1> to vector<4x256xi1>
    %45 = arith.select %44, %41, %42 : vector<4x256xi1>, vector<4x256xbf16>
    %46 = vector.extract_strided_slice %35 {offsets = [0, 112], sizes = [4, 256], strides = [1, 1]} : vector<4x512xbf16> to vector<4x256xbf16>
    %47 = vector.extract_strided_slice %35 {offsets = [0, 113], sizes = [4, 256], strides = [1, 1]} : vector<4x512xbf16> to vector<4x256xbf16>
    %cst_23 = arith.constant 0.000000e+00 : bf16
    %48 = vector.broadcast %cst_23 : bf16 to vector<4x256xbf16>
    %49 = vector.shape_cast %40 : vector<1x256xi1> to vector<1x256xi1>
    %50 = vector.broadcast %49 : vector<1x256xi1> to vector<4x256xi1>
    %51 = arith.select %50, %47, %48 : vector<4x256xi1>, vector<4x256xbf16>
    %52 = vector.extract_strided_slice %35 {offsets = [0, 127], sizes = [4, 256], strides = [1, 1]} : vector<4x512xbf16> to vector<4x256xbf16>
    %cst_24 = arith.constant 0.000000e+00 : bf16
    %53 = vector.broadcast %cst_24 : bf16 to vector<4x256xbf16>
    %54 = vector.shape_cast %38 : vector<1x256xi1> to vector<1x256xi1>
    %55 = vector.broadcast %54 : vector<1x256xi1> to vector<4x256xi1>
    %56 = arith.select %55, %52, %53 : vector<4x256xi1>, vector<4x256xbf16>
    %57 = vector.extract_strided_slice %35 {offsets = [0, 128], sizes = [4, 256], strides = [1, 1]} : vector<4x512xbf16> to vector<4x256xbf16>
    %58 = vector.extract_strided_slice %35 {offsets = [0, 129], sizes = [4, 256], strides = [1, 1]} : vector<4x512xbf16> to vector<4x256xbf16>
    %cst_25 = arith.constant 0.000000e+00 : bf16
    %59 = vector.broadcast %cst_25 : bf16 to vector<4x256xbf16>
    %60 = vector.shape_cast %40 : vector<1x256xi1> to vector<1x256xi1>
    %61 = vector.broadcast %60 : vector<1x256xi1> to vector<4x256xi1>
    %62 = arith.select %61, %58, %59 : vector<4x256xi1>, vector<4x256xbf16>
    %63 = vector.extract_strided_slice %35 {offsets = [0, 143], sizes = [4, 256], strides = [1, 1]} : vector<4x512xbf16> to vector<4x256xbf16>
    %cst_26 = arith.constant 0.000000e+00 : bf16
    %64 = vector.broadcast %cst_26 : bf16 to vector<4x256xbf16>
    %65 = vector.shape_cast %38 : vector<1x256xi1> to vector<1x256xi1>
    %66 = vector.broadcast %65 : vector<1x256xi1> to vector<4x256xi1>
    %67 = arith.select %66, %63, %64 : vector<4x256xi1>, vector<4x256xbf16>
    %68 = vector.extract_strided_slice %35 {offsets = [0, 144], sizes = [4, 256], strides = [1, 1]} : vector<4x512xbf16> to vector<4x256xbf16>
    %69 = vector.extract_strided_slice %35 {offsets = [0, 145], sizes = [4, 256], strides = [1, 1]} : vector<4x512xbf16> to vector<4x256xbf16>
    %cst_27 = arith.constant 0.000000e+00 : bf16
    %70 = vector.broadcast %cst_27 : bf16 to vector<4x256xbf16>
    %71 = vector.shape_cast %40 : vector<1x256xi1> to vector<1x256xi1>
    %72 = vector.broadcast %71 : vector<1x256xi1> to vector<4x256xi1>
    %73 = arith.select %72, %69, %70 : vector<4x256xi1>, vector<4x256xbf16>
    %74 = tpu.concatenate %45, %46, %51, %56, %57, %62, %67, %68, %73 in 0 : vector<4x256xbf16>, vector<4x256xbf16>, vector<4x256xbf16>, vector<4x256xbf16>, vector<4x256xbf16>, vector<4x256xbf16>, vector<4x256xbf16>, vector<4x256xbf16>, vector<4x256xbf16> -> vector<36x256xbf16>
    %c0_28 = arith.constant 0 : index
    %c0_29 = arith.constant 0 : index
    %75 = vector.load %arg8[%c0_28, %c0_29] : memref<4x36xbf16, #tpu.memory_space<vmem>>, vector<4x36xbf16>
    %cst_30 = arith.constant dense<0.000000e+00> : vector<4x256xf32>
    %76 = tpu.matmul %75, %74, %cst_30 {dimension_numbers = #tpu.dot_dimension_numbers<[1], [0], [0], [1], [0, 0, 1, 1], [], []>} : vector<4x36xbf16>, vector<36x256xbf16>, vector<4x256xf32> -> vector<4x256xf32>
    %c0_31 = arith.constant 0 : index
    %c0_32 = arith.constant 0 : index
    %77 = vector.load %arg9[%c0_31, %c0_32] : memref<4x1xf32, #tpu.memory_space<vmem>>, vector<4x1xf32>
    %78 = vector.broadcast %77 : vector<4x1xf32> to vector<4x256xf32>
    %79 = arith.addf %76, %78 : vector<4x256xf32>
    %80 = arith.addf %79, %3 : vector<4x256xf32>
    %cst_33 = arith.constant 0.000000e+00 : f32
    %81 = vector.broadcast %cst_33 : f32 to vector<4x256xf32>
    %82 = arith.maximumf %80, %81 : vector<4x256xf32>
    %c0_34 = arith.constant 0 : index
    %c0_35 = arith.constant 0 : index
    %c0_36 = arith.constant 0 : index
    %83 = vector.load %arg10[%c0_34, %c0_35, %c0_36] : memref<1x4x256xf32, #tpu.memory_space<vmem>>, vector<1x4x256xf32>
    %84 = vector.shape_cast %83 : vector<1x4x256xf32> to vector<4x256xf32>
    %85 = vector.shape_cast %82 : vector<4x256xf32> to vector<1x4x256xf32>
    tpu.vector_store %arg10[%c0_34, %c0_35, %c0_36], %85 {strides = array<i32>} : memref<1x4x256xf32, #tpu.memory_space<vmem>>, vector<1x4x256xf32>,
    return
  }
  func.func @transform_0(%arg0: i32, %arg1: i32) -> (i32, i32) {
    %c0_i32 = arith.constant 0 : i32
    %c0_i32_0 = arith.constant 0 : i32
    %c0_i32_1 = arith.constant 0 : i32
    return %c0_i32, %c0_i32_0 : i32, i32
  }
  func.func @transform_1(%arg0: i32, %arg1: i32) -> (i32, i32, i32) {
    %c0_i32 = arith.constant 0 : i32
    %c0_i32_0 = arith.constant 0 : i32
    return %arg0, %c0_i32, %arg1 : i32, i32, i32
  }
  func.func @transform_2(%arg0: i32, %arg1: i32) -> (i32, i32, i32) {
    %c2_i32 = arith.constant 2 : i32
    %0 = arith.muli %arg1, %c2_i32 : i32
    %c1_i32 = arith.constant 1 : i32
    %1 = arith.subi %0, %c1_i32 : i32
    %c0_i32 = arith.constant 0 : i32
    %2 = arith.maxsi %1, %c0_i32 : i32
    %c0_i32_0 = arith.constant 0 : i32
    %c0_i32_1 = arith.constant 0 : i32
    return %arg0, %c0_i32_0, %2 : i32, i32, i32
  }
  func.func @transform_3(%arg0: i32, %arg1: i32) -> (i32, i32, i32) {
    %c1_i32 = arith.constant 1 : i32
    %0 = arith.addi %arg1, %c1_i32 : i32
    %c2_i32 = arith.constant 2 : i32
    %1 = arith.muli %0, %c2_i32 : i32
    %c1_i32_0 = arith.constant 1 : i32
    %2 = arith.minsi %1, %c1_i32_0 : i32
    %c0_i32 = arith.constant 0 : i32
    %c0_i32_1 = arith.constant 0 : i32
    return %arg0, %c0_i32, %2 : i32, i32, i32
  }
  func.func @transform_4(%arg0: i32, %arg1: i32) -> (i32, i32) {
    %c0_i32 = arith.constant 0 : i32
    %c0_i32_0 = arith.constant 0 : i32
    %c0_i32_1 = arith.constant 0 : i32
    return %c0_i32, %c0_i32_0 : i32, i32
  }
  func.func @transform_5(%arg0: i32, %arg1: i32) -> (i32, i32) {
    %c0_i32 = arith.constant 0 : i32
    %c0_i32_0 = arith.constant 0 : i32
    %c0_i32_1 = arith.constant 0 : i32
    return %c0_i32, %c0_i32_0 : i32, i32
  }
  func.func @transform_6(%arg0: i32, %arg1: i32) -> (i32, i32) {
    %c0_i32 = arith.constant 0 : i32
    %c0_i32_0 = arith.constant 0 : i32
    %c0_i32_1 = arith.constant 0 : i32
    return %c0_i32, %c0_i32_0 : i32, i32
  }
  func.func @transform_7(%arg0: i32, %arg1: i32) -> (i32, i32) {
    %c0_i32 = arith.constant 0 : i32
    %c0_i32_0 = arith.constant 0 : i32
    %c0_i32_1 = arith.constant 0 : i32
    return %c0_i32, %c0_i32_0 : i32, i32
  }
  func.func @transform_8(%arg0: i32, %arg1: i32) -> (i32, i32, i32) {
    %c0_i32 = arith.constant 0 : i32
    %c0_i32_0 = arith.constant 0 : i32
    return %arg0, %c0_i32, %arg1 : i32, i32, i32
  }
}

</mosaic_0001>

<llo_original>
// kernel: aster_block_pallas.1
$region0: #{aster_block_pallas.1}
  #allocation0 [shape = 'u32[]', space=smem, size = 0x4, offset = 0x4, fixed_abs, tag = 'smem constant byte address 0x4 - core index']
  #allocation1 [shape = 'u32[144,128]{1,0:T(1,128)}', space=vmem, size = 0x12000, scoped, tag = 'internal scratch']
  %s0 = inlined_call_operand.vmem [shape: s32[1,256], index: 0, kind: input, shape index: {}]
  %s1 = inlined_call_operand.vmem [shape: f32[2,4,256], index: 1, kind: input, shape index: {}, may-alias: {1,2,3}]
  %s2 = inlined_call_operand.vmem [shape: f32[2,4,256], index: 2, kind: input, shape index: {}, may-alias: {1,2,3}]
  %s3 = inlined_call_operand.vmem [shape: f32[2,4,256], index: 3, kind: input, shape index: {}, may-alias: {1,2,3}]
  %s4 = inlined_call_operand.vmem [shape: bf16[4,4], index: 4, kind: input, shape index: {}]
  %s5 = inlined_call_operand.vmem [shape: f32[4,1], index: 5, kind: input, shape index: {}]
  %s6 = inlined_call_operand.vmem [shape: bf16[4,36], index: 6, kind: input, shape index: {}]
  %s7 = inlined_call_operand.vmem [shape: f32[4,1], index: 7, kind: input, shape index: {}]
  %s8 = inlined_call_operand.vmem [shape: f32[2,4,256], index: 8, kind: output, shape index: {}]
  %s9 = sld [smem:[#allocation0]]
  $region65: #{aster_block_pallas.1} parent=0
    _
  %s11 = ssub.s32 1, %s9
  %s12 = scalar_select 0, %s11, %s9
  loop: start=0, step=1, limit=4
  $region2: #{aster_block_pallas.1} parent=0 // loop_pre_header
    _
  $region3: #{aster_block_pallas.1} parent=0 // loop_header
    %s14 = sphi 0, %s18
    %p15 = scmp.ge.s32.totalorder %s14, 4
    %s21 = sphi 0, %s33
    %s22 = sphi 0, %s29
    %s23 = sphi 0, %s21
    %s24 = sphi 0, %s22
    %s25 = sphi 0, %s23
    %s26 = sphi 0, %s24
    %s34 = sphi 0, %s34
    %s36 = sphi 0, %s34
    %s37 = sphi 0, %s36
    %s51 = sphi 0, %s37
    %s59 = sphi 0, %s61
    %s62 = sphi 0, %s59
    %s63 = sphi 0, %s62
    %s79 = sphi 0, %s63
    %s95 = sphi 0, %s97
    %s98 = sphi 0, %s95
    %s99 = sphi 0, %s98
    %s115 = sphi 0, %s99
    %s131 = sphi 0, %s133
    %s134 = sphi 0, %s131
    %s135 = sphi 0, %s134
    %s151 = sphi 0, %s135
    %s155 = sphi 0, %s155
    %s157 = sphi 0, %s155
    %s158 = sphi 0, %s157
    %s172 = sphi 0, %s158
    %s176 = sphi 0, %s176
    %s178 = sphi 0, %s176
    %s179 = sphi 0, %s178
    %s193 = sphi 0, %s179
    %s197 = sphi 0, %s197
    %s199 = sphi 0, %s197
    %s200 = sphi 0, %s199
    %s214 = sphi 0, %s200
    %s218 = sphi 0, %s218
    %s220 = sphi 0, %s218
    %s221 = sphi 0, %s220
    %s235 = sphi 0, %s221
    %s243 = sphi 0, %s245
    %s246 = sphi 0, %s243
    %s247 = sphi 0, %s246
    %s263 = sphi 0, %s247
  $region4: #{aster_block_pallas.1} parent=0 // loop_header_branch
    %17 = sbr.rel (%p15) target = $region8
  $region5: #{aster_block_pallas.1} parent=0 // loop_body
    %s19 = ssub.s32 %s14, 1
    %s20 = ssub.s32 %s14, 2
    %s27 = sadd.s32 1, %s22
    %p28 = scmp.ge.s32.totalorder %s27, 1
    %s29 = scalar_select %p28, 0, %s27
    %s30 = sadd.s32 1, %s21
    %s31 = scalar_select %p28, %s30, %s21
    %p32 = scmp.ge.s32.totalorder %s31, 2
    %s33 = scalar_select %p32, 0, %s31
    %s35 = sadd.s32 %s34, 1
    %p38 = scmp.eq.s32.totalorder %s14, 1
    %p39 = scmp.ne.s32.totalorder %s34, %s36
    %p40 = scmp.eq.s32.totalorder %s14, 0
    %p41 = por %p39, %p40
    %p42 = scmp.ne.s32.totalorder %s34, %s36
    %p43 = scmp.eq.s32.totalorder %s19, 1
    %p44 = por %p42, %p43
    %p45 = scmp.ne.s32.totalorder %s36, %s37
    %p46 = scmp.eq.s32.totalorder %s19, 0
    %p47 = por %p45, %p46
    %p48 = scmp.ne.s32.totalorder %s36, %s37
    %p49 = scmp.eq.s32.totalorder %s20, 1
    %p50 = por %p48, %p49
    %p52 = scmp.ne.s32.totalorder %s37, %s51
    %p53 = scmp.eq.s32.totalorder %s20, 0
    %p54 = por %p52, %p53
    %s55 = ssub.s32 %s21, %s33
    %s56 = ssub.s32 %s22, %s29
    %s57 = sor.u32 %s55, %s56
    %p58 = scmp.eq.s32.totalorder %s57, 0
    %s60 = sadd.s32 %s59, 1
    %s61 = scalar_select %p58, %s59, %s60
    %p64 = pneg %p58
    %p65 = scmp.eq.s32.totalorder %s14, 1
    %p66 = por %p64, %p65
    %p67 = scmp.ne.s32.totalorder %s59, %s62
    %p68 = scmp.eq.s32.totalorder %s14, 0
    %p69 = por %p67, %p68
    %p70 = scmp.ne.s32.totalorder %s59, %s62
    %p71 = scmp.eq.s32.totalorder %s19, 1
    %p72 = por %p70, %p71
    %p73 = scmp.ne.s32.totalorder %s62, %s63
    %p74 = scmp.eq.s32.totalorder %s19, 0
    %p75 = por %p73, %p74
    %p76 = scmp.ne.s32.totalorder %s62, %s63
    %p77 = scmp.eq.s32.totalorder %s20, 1
    %p78 = por %p76, %p77
    %p80 = scmp.ne.s32.totalorder %s63, %s79
    %p81 = scmp.eq.s32.totalorder %s20, 0
    %p82 = por %p80, %p81
    %s83 = smul.u32 %s22, 2
    %s84 = ssub.s32 %s83, 1
    %p85 = scmp.gt.s32.totalorder %s84, 0
    %s86 = scalar_select %p85, %s84, 0
    %s87 = smul.u32 %s29, 2
    %s88 = ssub.s32 %s87, 1
    %p89 = scmp.gt.s32.totalorder %s88, 0
    %s90 = scalar_select %p89, %s88, 0
    %s91 = ssub.s32 %s21, %s33
    %s92 = ssub.s32 %s86, %s90
    %s93 = sor.u32 %s91, %s92
    %p94 = scmp.eq.s32.totalorder %s93, 0
    %s96 = sadd.s32 %s95, 1
    %s97 = scalar_select %p94, %s95, %s96
    %p100 = pneg %p94
    %p101 = scmp.eq.s32.totalorder %s14, 1
    %p102 = por %p100, %p101
    %p103 = scmp.ne.s32.totalorder %s95, %s98
    %p104 = scmp.eq.s32.totalorder %s14, 0
    %p105 = por %p103, %p104
    %p106 = scmp.ne.s32.totalorder %s95, %s98
    %p107 = scmp.eq.s32.totalorder %s19, 1
    %p108 = por %p106, %p107
    %p109 = scmp.ne.s32.totalorder %s98, %s99
    %p110 = scmp.eq.s32.totalorder %s19, 0
    %p111 = por %p109, %p110
    %p112 = scmp.ne.s32.totalorder %s98, %s99
    %p113 = scmp.eq.s32.totalorder %s20, 1
    %p114 = por %p112, %p113
    %p116 = scmp.ne.s32.totalorder %s99, %s115
    %p117 = scmp.eq.s32.totalorder %s20, 0
    %p118 = por %p116, %p117
    %s119 = sadd.s32 %s22, 1
    %s120 = smul.u32 %s119, 2
    %p121 = scmp.lt.s32.totalorder %s120, 1
    %s122 = scalar_select %p121, %s120, 1
    %s123 = sadd.s32 %s29, 1
    %s124 = smul.u32 %s123, 2
    %p125 = scmp.lt.s32.totalorder %s124, 1
    %s126 = scalar_select %p125, %s124, 1
    %s127 = ssub.s32 %s21, %s33
    %s128 = ssub.s32 %s122, %s126
    %s129 = sor.u32 %s127, %s128
    %p130 = scmp.eq.s32.totalorder %s129, 0
    %s132 = sadd.s32 %s131, 1
    %s133 = scalar_select %p130, %s131, %s132
    %p136 = pneg %p130
    %p137 = scmp.eq.s32.totalorder %s14, 1
    %p138 = por %p136, %p137
    %p139 = scmp.ne.s32.totalorder %s131, %s134
    %p140 = scmp.eq.s32.totalorder %s14, 0
    %p141 = por %p139, %p140
    %p142 = scmp.ne.s32.totalorder %s131, %s134
    %p143 = scmp.eq.s32.totalorder %s19, 1
    %p144 = por %p142, %p143
    %p145 = scmp.ne.s32.totalorder %s134, %s135
    %p146 = scmp.eq.s32.totalorder %s19, 0
    %p147 = por %p145, %p146
    %p148 = scmp.ne.s32.totalorder %s134, %s135
    %p149 = scmp.eq.s32.totalorder %s20, 1
    %p150 = por %p148, %p149
    %p152 = scmp.ne.s32.totalorder %s135, %s151
    %p153 = scmp.eq.s32.totalorder %s20, 0
    %p154 = por %p152, %p153
    %s156 = sadd.s32 %s155, 1
    %p159 = scmp.eq.s32.totalorder %s14, 1
    %p160 = scmp.ne.s32.totalorder %s155, %s157
    %p161 = scmp.eq.s32.totalorder %s14, 0
    %p162 = por %p160, %p161
    %p163 = scmp.ne.s32.totalorder %s155, %s157
    %p164 = scmp.eq.s32.totalorder %s19, 1
    %p165 = por %p163, %p164
    %p166 = scmp.ne.s32.totalorder %s157, %s158
    %p167 = scmp.eq.s32.totalorder %s19, 0
    %p168 = por %p166, %p167
    %p169 = scmp.ne.s32.totalorder %s157, %s158
    %p170 = scmp.eq.s32.totalorder %s20, 1
    %p171 = por %p169, %p170
    %p173 = scmp.ne.s32.totalorder %s158, %s172
    %p174 = scmp.eq.s32.totalorder %s20, 0
    %p175 = por %p173, %p174
    %s177 = sadd.s32 %s176, 1
    %p180 = scmp.eq.s32.totalorder %s14, 1
    %p181 = scmp.ne.s32.totalorder %s176, %s178
    %p182 = scmp.eq.s32.totalorder %s14, 0
    %p183 = por %p181, %p182
    %p184 = scmp.ne.s32.totalorder %s176, %s178
    %p185 = scmp.eq.s32.totalorder %s19, 1
    %p186 = por %p184, %p185
    %p187 = scmp.ne.s32.totalorder %s178, %s179
    %p188 = scmp.eq.s32.totalorder %s19, 0
    %p189 = por %p187, %p188
    %p190 = scmp.ne.s32.totalorder %s178, %s179
    %p191 = scmp.eq.s32.totalorder %s20, 1
    %p192 = por %p190, %p191
    %p194 = scmp.ne.s32.totalorder %s179, %s193
    %p195 = scmp.eq.s32.totalorder %s20, 0
    %p196 = por %p194, %p195
    %s198 = sadd.s32 %s197, 1
    %p201 = scmp.eq.s32.totalorder %s14, 1
    %p202 = scmp.ne.s32.totalorder %s197, %s199
    %p203 = scmp.eq.s32.totalorder %s14, 0
    %p204 = por %p202, %p203
    %p205 = scmp.ne.s32.totalorder %s197, %s199
    %p206 = scmp.eq.s32.totalorder %s19, 1
    %p207 = por %p205, %p206
    %p208 = scmp.ne.s32.totalorder %s199, %s200
    %p209 = scmp.eq.s32.totalorder %s19, 0
    %p210 = por %p208, %p209
    %p211 = scmp.ne.s32.totalorder %s199, %s200
    %p212 = scmp.eq.s32.totalorder %s20, 1
    %p213 = por %p211, %p212
    %p215 = scmp.ne.s32.totalorder %s200, %s214
    %p216 = scmp.eq.s32.totalorder %s20, 0
    %p217 = por %p215, %p216
    %s219 = sadd.s32 %s218, 1
    %p222 = scmp.eq.s32.totalorder %s14, 1
    %p223 = scmp.ne.s32.totalorder %s218, %s220
    %p224 = scmp.eq.s32.totalorder %s14, 0
    %p225 = por %p223, %p224
    %p226 = scmp.ne.s32.totalorder %s218, %s220
    %p227 = scmp.eq.s32.totalorder %s19, 1
    %p228 = por %p226, %p227
    %p229 = scmp.ne.s32.totalorder %s220, %s221
    %p230 = scmp.eq.s32.totalorder %s19, 0
    %p231 = por %p229, %p230
    %p232 = scmp.ne.s32.totalorder %s220, %s221
    %p233 = scmp.eq.s32.totalorder %s20, 1
    %p234 = por %p232, %p233
    %p236 = scmp.ne.s32.totalorder %s221, %s235
    %p237 = scmp.eq.s32.totalorder %s20, 0
    %p238 = por %p236, %p237
    %s239 = ssub.s32 %s21, %s33
    %s240 = ssub.s32 %s22, %s29
    %s241 = sor.u32 %s239, %s240
    %p242 = scmp.eq.s32.totalorder %s241, 0
    %s244 = sadd.s32 %s243, 1
    %s245 = scalar_select %p242, %s243, %s244
    %p248 = pneg %p242
    %p249 = scmp.eq.s32.totalorder %s14, 1
    %p250 = por %p248, %p249
    %p251 = scmp.ne.s32.totalorder %s243, %s246
    %p252 = scmp.eq.s32.totalorder %s14, 0
    %p253 = por %p251, %p252
    %p254 = scmp.ne.s32.totalorder %s243, %s246
    %p255 = scmp.eq.s32.totalorder %s19, 1
    %p256 = por %p254, %p255
    %p257 = scmp.ne.s32.totalorder %s246, %s247
    %p258 = scmp.eq.s32.totalorder %s19, 0
    %p259 = por %p257, %p258
    %p260 = scmp.ne.s32.totalorder %s246, %s247
    %p261 = scmp.eq.s32.totalorder %s20, 1
    %p262 = por %p260, %p261
    %p264 = scmp.ne.s32.totalorder %s247, %s263
    %p265 = scmp.eq.s32.totalorder %s20, 0
    %p266 = por %p264, %p265
    %p267 = scmp.le.s32.totalorder 1, %s14
    %p268 = scmp.lt.s32.totalorder %s14, 3
    %p269 = pnand %p267, %p268
    %p270 = pneg %p269
    // Predicated region
    $region9: #{aster_block_pallas.1} parent=5 // pred_check
      _
    $region10: #{aster_block_pallas.1} parent=5 // pred_check_branch
      %272 = sbr.rel (%p269) target = $region12
    $region11: #{aster_block_pallas.1} parent=5 // pred_region
      %s273 = ssub.s32 %s14, 1
      // Predicated region
      $region13: #{aster_block_pallas.1} parent=11 // pred_check
        %p274 = pneg %p47
      $region14: #{aster_block_pallas.1} parent=11 // pred_check_branch
        %276 = sbr.rel (%p274) target = $region16
      $region15: #{aster_block_pallas.1} parent=11 // pred_region
        _
      $region16: #{aster_block_pallas.1} parent=11 // pred_fallthru
        _
      // Predicated region
      $region17: #{aster_block_pallas.1} parent=11 // pred_check
        %p277 = pneg %p168
      $region18: #{aster_block_pallas.1} parent=11 // pred_check_branch
        %279 = sbr.rel (%p277) target = $region20
      $region19: #{aster_block_pallas.1} parent=11 // pred_region
        _
      $region20: #{aster_block_pallas.1} parent=11 // pred_fallthru
        _
      // Predicated region
      $region21: #{aster_block_pallas.1} parent=11 // pred_check
        %p280 = pneg %p189
      $region22: #{aster_block_pallas.1} parent=11 // pred_check_branch
        %282 = sbr.rel (%p280) target = $region24
      $region23: #{aster_block_pallas.1} parent=11 // pred_region
        _
      $region24: #{aster_block_pallas.1} parent=11 // pred_fallthru
        _
      // Predicated region
      $region25: #{aster_block_pallas.1} parent=11 // pred_check
        %p283 = pneg %p210
      $region26: #{aster_block_pallas.1} parent=11 // pred_check_branch
        %285 = sbr.rel (%p283) target = $region28
      $region27: #{aster_block_pallas.1} parent=11 // pred_region
        _
      $region28: #{aster_block_pallas.1} parent=11 // pred_fallthru
        _
      // Predicated region
      $region29: #{aster_block_pallas.1} parent=11 // pred_check
        %p286 = pneg %p231
      $region30: #{aster_block_pallas.1} parent=11 // pred_check_branch
        %288 = sbr.rel (%p286) target = $region32
      $region31: #{aster_block_pallas.1} parent=11 // pred_region
        _
      $region32: #{aster_block_pallas.1} parent=11 // pred_fallthru
        _
    $region12: #{aster_block_pallas.1} parent=5 // pred_fallthru
      _
    %p289 = scmp.lt.s32.totalorder %s14, 2
    // Predicated region
    $region33: #{aster_block_pallas.1} parent=5 // pred_check
      %p290 = pneg %p289
    $region34: #{aster_block_pallas.1} parent=5 // pred_check_branch
      %292 = sbr.rel (%p290) target = $region36
    $region35: #{aster_block_pallas.1} parent=5 // pred_region
      // Predicated region
      $region37: #{aster_block_pallas.1} parent=35 // pred_check
        %p293 = pneg %p69
      $region38: #{aster_block_pallas.1} parent=35 // pred_check_branch
        %295 = sbr.rel (%p293) target = $region40
      $region39: #{aster_block_pallas.1} parent=35 // pred_region
        %s296 = smul.u32 2, %s22
        %p297 = scmp.lt.s32.totalorder %s21, 1
        %s298 = scalar_select %p297, %s21, 1
        %p299 = scmp.lt.s32.totalorder %s296, 1
        %s300 = scalar_select %p299, %s296, 1
        %s301 = smul.addr %s298, 2
        %s302 = sadd.s32 %s300, %s301
        %s303 = smul.addr %s302, 4
        %s304 = scalar_lea.vmem %s1, %s303
        %s305 = smul.u32 2, %s22
      $region40: #{aster_block_pallas.1} parent=35 // pred_fallthru
        _
      // Predicated region
      $region41: #{aster_block_pallas.1} parent=35 // pred_check
        %p306 = pneg %p105
      $region42: #{aster_block_pallas.1} parent=35 // pred_check_branch
        %308 = sbr.rel (%p306) target = $region44
      $region43: #{aster_block_pallas.1} parent=35 // pred_region
        %s309 = smul.u32 %s22, 2
        %s310 = ssub.s32 %s309, 1
        %p311 = scmp.gt.s32.totalorder %s310, 0
        %s312 = scalar_select %p311, %s310, 0
        %p313 = scmp.lt.s32.totalorder %s21, 1
        %s314 = scalar_select %p313, %s21, 1
        %p315 = scmp.lt.s32.totalorder %s312, 1
        %s316 = scalar_select %p315, %s312, 1
        %s317 = smul.addr %s314, 2
        %s318 = sadd.s32 %s316, %s317
        %s319 = smul.addr %s318, 4
        %s320 = scalar_lea.vmem %s2, %s319
        %s321 = smul.u32 %s22, 2
        %s322 = ssub.s32 %s321, 1
        %p323 = scmp.gt.s32.totalorder %s322, 0
        %s324 = scalar_select %p323, %s322, 0
      $region44: #{aster_block_pallas.1} parent=35 // pred_fallthru
        _
      // Predicated region
      $region45: #{aster_block_pallas.1} parent=35 // pred_check
        %p325 = pneg %p141
      $region46: #{aster_block_pallas.1} parent=35 // pred_check_branch
        %327 = sbr.rel (%p325) target = $region48
      $region47: #{aster_block_pallas.1} parent=35 // pred_region
        %s328 = sadd.s32 %s22, 1
        %s329 = smul.u32 %s328, 2
        %p330 = scmp.lt.s32.totalorder %s329, 1
        %s331 = scalar_select %p330, %s329, 1
        %p332 = scmp.lt.s32.totalorder %s21, 1
        %s333 = scalar_select %p332, %s21, 1
        %p334 = scmp.lt.s32.totalorder %s331, 1
        %s335 = scalar_select %p334, %s331, 1
        %s336 = smul.addr %s333, 2
        %s337 = sadd.s32 %s335, %s336
        %s338 = smul.addr %s337, 4
        %s339 = scalar_lea.vmem %s3, %s338
        %s340 = sadd.s32 %s22, 1
        %s341 = smul.u32 %s340, 2
        %p342 = scmp.lt.s32.totalorder %s341, 1
        %s343 = scalar_select %p342, %s341, 1
      $region48: #{aster_block_pallas.1} parent=35 // pred_fallthru
        _
    $region36: #{aster_block_pallas.1} parent=5 // pred_fallthru
      _
    %p344 = scmp.le.s32.totalorder 1, %s14
    %p345 = scmp.lt.s32.totalorder %s14, 3
    %p346 = pnand %p344, %p345
    %p347 = pneg %p346
    // Predicated region
    $region49: #{aster_block_pallas.1} parent=5 // pred_check
      _
    $region50: #{aster_block_pallas.1} parent=5 // pred_check_branch
      %349 = sbr.rel (%p346) target = $region52
    $region51: #{aster_block_pallas.1} parent=5 // pred_region
      %s350 = ssub.s32 %s14, 1
      %p351 = pneg %p47
      %p352 = pneg %p44
      %s353 = smul.u32 2, %s24
      %p354 = scmp.lt.s32.totalorder %s23, 1
      %s355 = scalar_select %p354, %s23, 1
      %p356 = scmp.lt.s32.totalorder %s353, 1
      %s357 = scalar_select %p356, %s353, 1
      %s358 = smul.addr %s355, 2
      %s359 = sadd.s32 %s357, %s358
      %s360 = smul.addr %s359, 4
      %s361 = scalar_lea.vmem %s1, %s360
      %p362 = pneg %p75
      %p363 = pneg %p72
      %s364 = smul.u32 %s24, 2
      %s365 = ssub.s32 %s364, 1
      %p366 = scmp.gt.s32.totalorder %s365, 0
      %s367 = scalar_select %p366, %s365, 0
      %p368 = scmp.lt.s32.totalorder %s23, 1
      %s369 = scalar_select %p368, %s23, 1
      %p370 = scmp.lt.s32.totalorder %s367, 1
      %s371 = scalar_select %p370, %s367, 1
      %s372 = smul.addr %s369, 2
      %s373 = sadd.s32 %s371, %s372
      %s374 = smul.addr %s373, 4
      %s375 = scalar_lea.vmem %s2, %s374
      %p376 = pneg %p111
      %p377 = pneg %p108
      %s378 = sadd.s32 %s24, 1
      %s379 = smul.u32 %s378, 2
      %p380 = scmp.lt.s32.totalorder %s379, 1
      %s381 = scalar_select %p380, %s379, 1
      %p382 = scmp.lt.s32.totalorder %s23, 1
      %s383 = scalar_select %p382, %s23, 1
      %p384 = scmp.lt.s32.totalorder %s381, 1
      %s385 = scalar_select %p384, %s381, 1
      %s386 = smul.addr %s383, 2
      %s387 = sadd.s32 %s385, %s386
      %s388 = smul.addr %s387, 4
      %s389 = scalar_lea.vmem %s3, %s388
      %p390 = pneg %p147
      %p391 = pneg %p144
      %p392 = pneg %p168
      %p393 = pneg %p165
      %p394 = pneg %p189
      %p395 = pneg %p186
      %p396 = pneg %p210
      %p397 = pneg %p207
      %p398 = pneg %p231
      %p399 = pneg %p228
      %p400 = pneg %p259
      %p401 = pneg %p256
      %s402 = smul.u32 2, %s24
      %p403 = scmp.lt.s32.totalorder %s23, 1
      %s404 = scalar_select %p403, %s23, 1
      %p405 = scmp.lt.s32.totalorder %s402, 1
      %s406 = scalar_select %p405, %s402, 1
      %s407 = smul.addr %s404, 2
      %s408 = sadd.s32 %s406, %s407
      %s409 = smul.addr %s408, 4
      %s410 = scalar_lea.vmem %s8, %s409
      %s411 = smul.u32 2, %s24
      %p412 = scmp.lt.s32.totalorder %s23, 1
      %s413 = scalar_select %p412, %s23, 1
      %p414 = scmp.lt.s32.totalorder %s411, 1
      %s415 = scalar_select %p414, %s411, 1
      %s416 = smul.addr %s413, 2
      %s417 = sadd.s32 %s415, %s416
      %s418 = smul.addr %s417, 4
      %s419 = scalar_lea.vmem %s1, %s418
      %s420 = smul.u32 2, %s24
      %s421 = smul.u32 %s24, 2
      %s422 = ssub.s32 %s421, 1
      %p423 = scmp.gt.s32.totalorder %s422, 0
      %s424 = scalar_select %p423, %s422, 0
      %p425 = scmp.lt.s32.totalorder %s23, 1
      %s426 = scalar_select %p425, %s23, 1
      %p427 = scmp.lt.s32.totalorder %s424, 1
      %s428 = scalar_select %p427, %s424, 1
      %s429 = smul.addr %s426, 2
      %s430 = sadd.s32 %s428, %s429
      %s431 = smul.addr %s430, 4
      %s432 = scalar_lea.vmem %s2, %s431
      %s433 = smul.u32 %s24, 2
      %s434 = ssub.s32 %s433, 1
      %p435 = scmp.gt.s32.totalorder %s434, 0
      %s436 = scalar_select %p435, %s434, 0
      %s437 = sadd.s32 %s24, 1
      %s438 = smul.u32 %s437, 2
      %p439 = scmp.lt.s32.totalorder %s438, 1
      %s440 = scalar_select %p439, %s438, 1
      %p441 = scmp.lt.s32.totalorder %s23, 1
      %s442 = scalar_select %p441, %s23, 1
      %p443 = scmp.lt.s32.totalorder %s440, 1
      %s444 = scalar_select %p443, %s440, 1
      %s445 = smul.addr %s442, 2
      %s446 = sadd.s32 %s444, %s445
      %s447 = smul.addr %s446, 4
      %s448 = scalar_lea.vmem %s3, %s447
      %s449 = sadd.s32 %s24, 1
      %s450 = smul.u32 %s449, 2
      %p451 = scmp.lt.s32.totalorder %s450, 1
      %s452 = scalar_select %p451, %s450, 1
      %s453 = smul.u32 2, %s24
      %p454 = scmp.lt.s32.totalorder %s23, 1
      %s455 = scalar_select %p454, %s23, 1
      %p456 = scmp.lt.s32.totalorder %s453, 1
      %s457 = scalar_select %p456, %s453, 1
      %s458 = smul.addr %s455, 2
      %s459 = sadd.s32 %s457, %s458
      %s460 = smul.addr %s459, 4
      %s461 = scalar_lea.vmem %s8, %s460
      %s462 = smul.u32 2, %s24
      %v466 = vld [vmem:[%s4] sm:$0x3]
      %v467 = vld [vmem:[%s5] sm:$0xf]
      %v468 = vld [vmem:[%s419] sm:$0xff]
      %v470 = vcombine.high %v468, %v468
      %v472 = vpack.c.bf16 %v468, %v468
      %v473 = vpack.c.bf16 %v470, %v470
      %475 = vset.pattern.permute.xlu0 0
      %476 = vperm.xlu0 %475, %v467
      %v477 = vpop.permute.xlu0 %476
      %vm479 = vcmask 31744
      %v481 = vsel %vm479, %v466, 0
      %vm483 = vcmask 1041408
      %v485 = vsel %vm483, %v472, 0
      %v488 = vsel %vm483, %v473, 0
      %490 = vmatprep.subr.bf16.mxu0 0
      %491 = vmatpush1.bf16.msra.mxu0 0
      %492 = vmatprep.subr.bf16.mxu0 0
      %493 = vmatpush1.bf16.msra.mxu0 0
      %494 = vmatprep.subr.bf16.mxu0 0
      %495 = vmatpush1.bf16.msra.mxu0 0
      %496 = vmatprep.subr.bf16.mxu0 0
      %497 = vmatpush1.bf16.msra.mxu0 0
      %498 = vmatprep.subr.bf16.mxu0 0
      %499 = vmatpush1.bf16.msra.mxu0 0
      %500 = vmatprep.subr.bf16.mxu0 0
      %501 = vmatpush1.bf16.msra.mxu0 0
      %502 = vmatprep.subr.bf16.mxu0 0
      %503 = vmatpush1.bf16.msra.mxu0 0
      %504 = vmatprep.subr.bf16.mxu0 %v488
      %505 = vmatpush1.bf16.msra.mxu0 %v485
      %506 = vmatprep.subr.bf16.mxu0 0
      %507 = vmatpush2.bf16.msra.mxu0 0
      %508 = vmatprep.subr.bf16.mxu0 0
      %509 = vmatpush2.bf16.msra.mxu0 0
      %510 = vmatprep.subr.bf16.mxu0 0
      %511 = vmatpush2.bf16.msra.mxu0 0
      %512 = vmatprep.subr.bf16.mxu0 0
      %513 = vmatpush2.bf16.msra.mxu0 0
      %514 = vmatprep.subr.bf16.mxu0 0
      %515 = vmatpush2.bf16.msra.mxu0 0
      %516 = vmatprep.subr.bf16.mxu0 0
      %517 = vmatpush2.bf16.msra.mxu0 0
      %518 = vmatprep.subr.bf16.mxu0 0
      %519 = vmatpush2.bf16.msra.mxu0 0
      %520 = vmatprep.subr.bf16.mxu0 0
      %521 = vmatpush2.bf16.msra.mxu0 0
      %522 = vmatprep.mubr.bf16.mxu0 0
      %523 = vmatmul.mubr.bf16.gmra.mxu0 %v481
      %v524 = vpop.f32.mrf.mxu0
      %v525 = vadd.f32 %v477, %v524
      %v526 = vpop.f32.mrf.mxu0
      %v527 = vadd.f32 %v477, %v526
      %v528 = vpop.f32.mrf.mxu0
      %v529 = vpop.f32.mrf.mxu0
      %530 = vdwg.mxu0
      %v531 = vmax.f32 %v525, 0.0
      %v532 = vmax.f32 %v527, 0.0
      %v533 = vpack.c.bf16 %v531, %v531
      %v534 = vpack.c.bf16 %v532, %v532
      %v535 = vld [vmem:[%s432] sm:$0xf]
      %v536 = vpack.c.bf16 %v535, %v535
      %v538 = vsel %vm483, %v536, 0
      %540 = vmatprep.subr.bf16.mxu0 0
      %541 = vmatpush1.bf16.msra.mxu0 0
      %542 = vmatprep.subr.bf16.mxu0 0
      %543 = vmatpush1.bf16.msra.mxu0 0
      %544 = vmatprep.subr.bf16.mxu0 0
      %545 = vmatpush1.bf16.msra.mxu0 0
      %546 = vmatprep.subr.bf16.mxu0 0
      %547 = vmatpush1.bf16.msra.mxu0 0
      %548 = vmatprep.subr.bf16.mxu0 0
      %549 = vmatpush1.bf16.msra.mxu0 0
      %550 = vmatprep.subr.bf16.mxu0 0
      %551 = vmatpush1.bf16.msra.mxu0 0
      %552 = vmatprep.subr.bf16.mxu0 0
      %553 = vmatpush1.bf16.msra.mxu0 0
      %554 = vmatprep.subr.bf16.mxu0 0
      %555 = vmatpush1.bf16.msra.mxu0 %v538
      %556 = vmatprep.subr.bf16.mxu0 0
      %557 = vmatpush2.bf16.msra.mxu0 0
      %558 = vmatprep.subr.bf16.mxu0 0
      %559 = vmatpush2.bf16.msra.mxu0 0
      %560 = vmatprep.subr.bf16.mxu0 0
      %561 = vmatpush2.bf16.msra.mxu0 0
      %562 = vmatprep.subr.bf16.mxu0 0
      %563 = vmatpush2.bf16.msra.mxu0 0
      %564 = vmatprep.subr.bf16.mxu0 0
      %565 = vmatpush2.bf16.msra.mxu0 0
      %566 = vmatprep.subr.bf16.mxu0 0
      %567 = vmatpush2.bf16.msra.mxu0 0
      %568 = vmatprep.subr.bf16.mxu0 0
      %569 = vmatpush2.bf16.msra.mxu0 0
      %570 = vmatprep.subr.bf16.mxu0 0
      %571 = vmatpush2.bf16.msra.mxu0 0
      %572 = vmatprep.mubr.bf16.mxu0 0
      %573 = vmatmul.mubr.bf16.gmra.mxu0 %v481
      %v574 = vpop.f32.mrf.mxu0
      %v575 = vadd.f32 %v477, %v574
      %v576 = vpop.f32.mrf.mxu0
      %v577 = vpop.f32.mrf.mxu0
      %v578 = vpop.f32.mrf.mxu0
      %579 = vdwg.mxu0
      %v580 = vmax.f32 %v575, 0.0
      %p581 = scmp.gt.s32.totalorder %s24, 0
      %s582 = scalar_select %p581, 1, 0
      %v583 = vstv %s582
      %vm584 = vcmp.eq.s32.totalorder %v583, 1
      %v585 = vsel %vm584, %v580, 0.0
      %v586 = vpack.c.bf16 %v585, %v585
      %v587 = vld [vmem:[%s448] sm:$0xf]
      %v588 = vpack.c.bf16 %v587, %v587
      %v590 = vsel %vm483, %v588, 0
      %592 = vmatprep.subr.bf16.mxu0 0
      %593 = vmatpush1.bf16.msra.mxu0 0
      %594 = vmatprep.subr.bf16.mxu0 0
      %595 = vmatpush1.bf16.msra.mxu0 0
      %596 = vmatprep.subr.bf16.mxu0 0
      %597 = vmatpush1.bf16.msra.mxu0 0
      %598 = vmatprep.subr.bf16.mxu0 0
      %599 = vmatpush1.bf16.msra.mxu0 0
      %600 = vmatprep.subr.bf16.mxu0 0
      %601 = vmatpush1.bf16.msra.mxu0 0
      %602 = vmatprep.subr.bf16.mxu0 0
      %603 = vmatpush1.bf16.msra.mxu0 0
      %604 = vmatprep.subr.bf16.mxu0 0
      %605 = vmatpush1.bf16.msra.mxu0 0
      %606 = vmatprep.subr.bf16.mxu0 0
      %607 = vmatpush1.bf16.msra.mxu0 %v590
      %608 = vmatprep.subr.bf16.mxu0 0
      %609 = vmatpush2.bf16.msra.mxu0 0
      %610 = vmatprep.subr.bf16.mxu0 0
      %611 = vmatpush2.bf16.msra.mxu0 0
      %612 = vmatprep.subr.bf16.mxu0 0
      %613 = vmatpush2.bf16.msra.mxu0 0
      %614 = vmatprep.subr.bf16.mxu0 0
      %615 = vmatpush2.bf16.msra.mxu0 0
      %616 = vmatprep.subr.bf16.mxu0 0
      %617 = vmatpush2.bf16.msra.mxu0 0
      %618 = vmatprep.subr.bf16.mxu0 0
      %619 = vmatpush2.bf16.msra.mxu0 0
      %620 = vmatprep.subr.bf16.mxu0 0
      %621 = vmatpush2.bf16.msra.mxu0 0
      %622 = vmatprep.subr.bf16.mxu0 0
      %623 = vmatpush2.bf16.msra.mxu0 0
      %624 = vmatprep.mubr.bf16.mxu0 0
      %625 = vmatmul.mubr.bf16.gmra.mxu0 %v481
      %v626 = vpop.f32.mrf.mxu0
      %v627 = vadd.f32 %v477, %v626
      %v628 = vpop.f32.mrf.mxu0
      %v629 = vpop.f32.mrf.mxu0
      %v630 = vpop.f32.mrf.mxu0
      %631 = vdwg.mxu0
      %v632 = vmax.f32 %v627, 0.0
      %p633 = scmp.lt.s32.totalorder %s24, 0
      %s634 = scalar_select %p633, 1, 0
      %v635 = vstv %s634
      %vm636 = vcmp.eq.s32.totalorder %v635, 1
      %v637 = vsel %vm636, %v632, 0.0
      %v638 = vpack.c.bf16 %v637, %v637
      %v639 = vld [vmem:[%s0] sm:$0x3]
      %vm640 = vcmp.ge.s32.totalorder %v639, 1
      %vm641 = vcmp.le.s32.totalorder %v639, 14
      %v642 = vsel %vm640, 1, 0
      %v643 = vlaneseq
      %v644 = vshrl.u32 %v643, 7
      %v645 = vsub.s32 0, %v644
      %v646 = vrot.slane %v642, %v645
      %v647 = vlaneseq
      %v648 = vshrl.u32 %v647, 7
      %v649 = vsub.s32 1, %v648
      %v650 = vrot.slane %v642, %v649
      %vm651 = vcmp.eq.s32.totalorder %v646, 1
      %vm652 = vcmp.eq.s32.totalorder %v650, 1
      %vm653 = vmpackc.low %vm652, %vm651
      %v654 = vsel %vm653, 65537, 0
      %v655 = vlaneseq
      %v656 = vshrl.u32 %v655, 7
      %v657 = vsub.s32 0, %v656
      %v658 = vrot.slane %v654, %v657
      %v659 = vlaneseq
      %v660 = vshrl.u32 %v659, 7
      %v661 = vsub.s32 4, %v660
      %v662 = vrot.slane %v654, %v661
      %663 = vrot.lane.b32.xlu0 %v658, 111
      %v664 = vpop.permute.xlu0 %663
      %665 = vrot.lane.b32.xlu0 %v662, 111
      %v666 = vpop.permute.xlu0 %665
      %vm667 = vcmask 908288
      %v668 = vsel %vm667, %v664, %v666
      %vm669 = vcmp.ne.s16.totalorder %v664, 0
      %vm670 = vcmp.ne.s16.totalorder %v668, 0
      %vm671 = vcmp.ne.s16.totalorder %v666, 0
      %v672 = vsel %vm669, %v586, 0
      %v673 = vsel %vm670, %v533, 0
      %v674 = vsel %vm671, %v534, 0
      %v675 = vsel %vm641, 1, 0
      %v676 = vlaneseq
      %v677 = vshrl.u32 %v676, 7
      %v678 = vsub.s32 0, %v677
      %v679 = vrot.slane %v675, %v678
      %v680 = vlaneseq
      %v681 = vshrl.u32 %v680, 7
      %v682 = vsub.s32 1, %v681
      %v683 = vrot.slane %v675, %v682
      %vm684 = vcmp.eq.s32.totalorder %v679, 1
      %vm685 = vcmp.eq.s32.totalorder %v683, 1
      %vm686 = vmpackc.low %vm685, %vm684
      %v687 = vsel %vm686, 65537, 0
      %v688 = vlaneseq
      %v689 = vshrl.u32 %v688, 7
      %v690 = vsub.s32 0, %v689
      %v691 = vrot.slane %v687, %v690
      %v692 = vlaneseq
      %v693 = vshrl.u32 %v692, 7
      %v694 = vsub.s32 4, %v693
      %v695 = vrot.slane %v687, %v694
      %696 = vrot.lane.b32.xlu0 %v691, 113
      %v697 = vpop.permute.xlu0 %696
      %698 = vrot.lane.b32.xlu0 %v695, 113
      %v699 = vpop.permute.xlu0 %698
      %vm700 = vcmask 924672
      %v701 = vsel %vm700, %v697, %v699
      %vm702 = vcmp.ne.s16.totalorder %v697, 0
      %vm703 = vcmp.ne.s16.totalorder %v701, 0
      %vm704 = vcmp.ne.s16.totalorder %v699, 0
      %v705 = vsel %vm702, %v586, 0
      %v706 = vsel %vm703, %v533, 0
      %v707 = vsel %vm704, %v534, 0
      %708 = vrot.lane.b32.xlu0 %v658, 127
      %v709 = vpop.permute.xlu0 %708
      %710 = vrot.lane.b32.xlu0 %v662, 127
      %v711 = vpop.permute.xlu0 %710
      %vm712 = vcmask 1039360
      %v713 = vsel %vm712, %v709, %v711
      %vm714 = vcmp.ne.s16.totalorder %v709, 0
      %vm715 = vcmp.ne.s16.totalorder %v713, 0
      %vm716 = vcmp.ne.s16.totalorder %v711, 0
      %v717 = vsel %vm714, %v586, 0
      %v718 = vsel %vm715, %v533, 0
      %v719 = vsel %vm716, %v534, 0
      %720 = vrot.lane.b32.xlu0 %v691, 1
      %v721 = vpop.permute.xlu0 %720
      %722 = vrot.lane.b32.xlu0 %v695, 1
      %v723 = vpop.permute.xlu0 %722
      %vm724 = vcmask 7168
      %v725 = vsel %vm724, %v721, %v723
      %vm726 = vcmp.ne.s16.totalorder %v721, 0
      %vm727 = vcmp.ne.s16.totalorder %v725, 0
      %vm728 = vcmp.ne.s16.totalorder %v723, 0
      %v729 = vsel %vm726, %v533, 0
      %v730 = vsel %vm727, %v534, 0
      %v731 = vsel %vm728, %v638, 0
      %732 = vrot.lane.b32.xlu0 %v658, 15
      %v733 = vpop.permute.xlu0 %732
      %734 = vrot.lane.b32.xlu0 %v662, 15
      %v735 = vpop.permute.xlu0 %734
      %vm736 = vcmask 121856
      %v737 = vsel %vm736, %v733, %v735
      %vm738 = vcmp.ne.s16.totalorder %v733, 0
      %vm739 = vcmp.ne.s16.totalorder %v737, 0
      %vm740 = vcmp.ne.s16.totalorder %v735, 0
      %v741 = vsel %vm738, %v533, 0
      %v742 = vsel %vm739, %v534, 0
      %v743 = vsel %vm740, %v638, 0
      %744 = vrot.lane.b32.xlu0 %v691, 17
      %v745 = vpop.permute.xlu0 %744
      %746 = vrot.lane.b32.xlu0 %v695, 17
      %v747 = vpop.permute.xlu0 %746
      %vm748 = vcmask 138240
      %v749 = vsel %vm748, %v745, %v747
      %vm750 = vcmp.ne.s16.totalorder %v745, 0
      %vm751 = vcmp.ne.s16.totalorder %v749, 0
      %vm752 = vcmp.ne.s16.totalorder %v747, 0
      %v753 = vsel %vm750, %v533, 0
      %v754 = vsel %vm751, %v534, 0
      %v755 = vsel %vm752, %v638, 0
      %v759 = vrot.slane %v586, 6
      %v760 = vrot.slane %v533, 6
      %v761 = vrot.slane %v534, 6
      %762 = vrot.lane.b32.xlu0 %v759, 127
      %v763 = vpop.permute.xlu0 %762
      %764 = vrot.lane.b32.xlu0 %v760, 127
      %v765 = vpop.permute.xlu0 %764
      %766 = vrot.lane.b32.xlu0 %v761, 127
      %v767 = vpop.permute.xlu0 %766
      %v768 = vsel %vm712, %v763, %v765
      %v769 = vsel %vm712, %v765, %v767
      %v773 = vrot.slane %v705, 4
      %v774 = vrot.slane %v706, 4
      %v775 = vrot.slane %v707, 4
      %776 = vrot.lane.b32.xlu0 %v773, 126
      %v777 = vpop.permute.xlu0 %776
      %778 = vrot.lane.b32.xlu0 %v774, 126
      %v779 = vpop.permute.xlu0 %778
      %780 = vrot.lane.b32.xlu0 %v775, 126
      %v781 = vpop.permute.xlu0 %780
      %vm782 = vcmask 1031168
      %v783 = vsel %vm782, %v777, %v779
      %v784 = vsel %vm782, %v779, %v781
      %v788 = vrot.slane %v717, 2
      %v789 = vrot.slane %v718, 2
      %v790 = vrot.slane %v719, 2
      %791 = vrot.lane.b32.xlu0 %v788, 112
      %v792 = vpop.permute.xlu0 %791
      %793 = vrot.lane.b32.xlu0 %v789, 112
      %v794 = vpop.permute.xlu0 %793
      %795 = vrot.lane.b32.xlu0 %v790, 112
      %v796 = vpop.permute.xlu0 %795
      %vm797 = vcmask 916480
      %v798 = vsel %vm797, %v792, %v794
      %v799 = vsel %vm797, %v794, %v796
      %800 = vrot.lane.b32.xlu0 %v533, 111
      %v801 = vpop.permute.xlu0 %800
      %802 = vrot.lane.b32.xlu0 %v534, 111
      %v803 = vpop.permute.xlu0 %802
      %v804 = vsel %vm667, %v801, %v803
      %v808 = vrot.slane %v729, 6
      %v809 = vrot.slane %v730, 6
      %v810 = vrot.slane %v731, 6
      %811 = vrot.lane.b32.xlu0 %v808, 110
      %v812 = vpop.permute.xlu0 %811
      %813 = vrot.lane.b32.xlu0 %v809, 110
      %v814 = vpop.permute.xlu0 %813
      %815 = vrot.lane.b32.xlu0 %v810, 110
      %v816 = vpop.permute.xlu0 %815
      %vm817 = vcmask 900096
      %v818 = vsel %vm817, %v812, %v814
      %v819 = vsel %vm817, %v814, %v816
      %v823 = vrot.slane %v741, 4
      %v824 = vrot.slane %v742, 4
      %v825 = vrot.slane %v743, 4
      %826 = vrot.lane.b32.xlu0 %v823, 96
      %v827 = vpop.permute.xlu0 %826
      %828 = vrot.lane.b32.xlu0 %v824, 96
      %v829 = vpop.permute.xlu0 %828
      %830 = vrot.lane.b32.xlu0 %v825, 96
      %v831 = vpop.permute.xlu0 %830
      %vm832 = vcmask 785408
      %v833 = vsel %vm832, %v827, %v829
      %v834 = vsel %vm832, %v829, %v831
      %v836 = vrot.slane %v533, 2
      %v837 = vrot.slane %v534, 2
      %v838 = vrot.slane %v638, 2
      %839 = vrot.lane.b32.xlu0 %v836, 95
      %v840 = vpop.permute.xlu0 %839
      %841 = vrot.lane.b32.xlu0 %v837, 95
      %v842 = vpop.permute.xlu0 %841
      %843 = vrot.lane.b32.xlu0 %v838, 95
      %v844 = vpop.permute.xlu0 %843
      %vm845 = vcmask 777216
      %v846 = vsel %vm845, %v840, %v842
      %v847 = vsel %vm845, %v842, %v844
      %851 = vrot.lane.b32.xlu0 %v753, 94
      %v852 = vpop.permute.xlu0 %851
      %853 = vrot.lane.b32.xlu0 %v754, 94
      %v854 = vpop.permute.xlu0 %853
      %855 = vrot.lane.b32.xlu0 %v755, 94
      %v856 = vpop.permute.xlu0 %855
      %vm857 = vcmask 769024
      %v858 = vsel %vm857, %v852, %v854
      %v859 = vsel %vm857, %v854, %v856
      %v862 = vsel %vm483, %v672, %v768
      %v865 = vsel %vm483, %v673, %v769
      %v868 = vsel %vm483, %v674, %v767
      %vm869 = vcmask 1043456
      %v871 = vsel %vm869, %v862, %v783
      %v873 = vsel %vm869, %v865, %v784
      %v875 = vsel %vm869, %v868, %v781
      %vm876 = vcmask 1045504
      %v878 = vsel %vm876, %v871, %v798
      %v880 = vsel %vm876, %v873, %v799
      %v882 = vsel %vm876, %v875, %v796
      %v885 = vsel %vm483, %v801, %v812
      %v888 = vsel %vm483, %v804, %v818
      %v891 = vsel %vm483, %v803, %v819
      %v893 = vsel %vm869, %v885, %v827
      %v895 = vsel %vm869, %v888, %v833
      %v897 = vsel %vm869, %v891, %v834
      %v899 = vsel %vm876, %v893, %v840
      %v901 = vsel %vm876, %v895, %v846
      %v903 = vsel %vm876, %v897, %v847
      %v904 = vld [vmem:[%s6] sm:$0x3]
      %v905 = vld [vmem:[%s7] sm:$0xf]
      %907 = vset.pattern.permute.xlu0 0
      %908 = vperm.xlu0 %907, %v905
      %v909 = vpop.permute.xlu0 %908
      %917 = vrot.lane.b32.xlu0 %v878, 17
      %v918 = vpop.permute.xlu0 %917
      %919 = vrot.lane.b32.xlu0 %v880, 17
      %v920 = vpop.permute.xlu0 %919
      %921 = vrot.lane.b32.xlu0 %v882, 17
      %v922 = vpop.permute.xlu0 %921
      %923 = vrot.lane.b32.xlu0 %v899, 17
      %v924 = vpop.permute.xlu0 %923
      %925 = vrot.lane.b32.xlu0 %v901, 17
      %v926 = vpop.permute.xlu0 %925
      %927 = vrot.lane.b32.xlu0 %v903, 17
      %v928 = vpop.permute.xlu0 %927
      %929 = vrot.lane.b32.xlu0 %v852, 17
      %v930 = vpop.permute.xlu0 %929
      %931 = vrot.lane.b32.xlu0 %v858, 17
      %v932 = vpop.permute.xlu0 %931
      %933 = vrot.lane.b32.xlu0 %v859, 17
      %v934 = vpop.permute.xlu0 %933
      %v935 = vsel %vm748, %v918, %v920
      %v936 = vsel %vm748, %v920, %v922
      %v937 = vsel %vm748, %v924, %v926
      %v938 = vsel %vm748, %v926, %v928
      %v939 = vsel %vm748, %v930, %v932
      %v940 = vsel %vm748, %v932, %v934
      %vm945 = vcmask 293888
      %v947 = vsel %vm945, %v904, 0
      %v950 = vsel %vm483, %v939, 0
      %v953 = vsel %vm483, %v940, 0
      %955 = vmatprep.subr.bf16.mxu0 0
      %956 = vmatpush1.bf16.msra.mxu0 0
      %957 = vmatprep.subr.bf16.mxu0 0
      %958 = vmatpush1.bf16.msra.mxu0 0
      %959 = vmatprep.subr.bf16.mxu0 0
      %960 = vmatpush1.bf16.msra.mxu0 0
      %961 = vmatprep.subr.bf16.mxu0 0
      %962 = vmatpush1.bf16.msra.mxu0 0
      %963 = vmatprep.subr.bf16.mxu0 0
      %964 = vmatpush1.bf16.msra.mxu0 0
      %965 = vmatprep.subr.bf16.mxu0 %v953
      %966 = vmatpush1.bf16.msra.mxu0 %v950
      %967 = vmatprep.subr.bf16.mxu0 %v938
      %968 = vmatpush1.bf16.msra.mxu0 %v937
      %969 = vmatprep.subr.bf16.mxu0 %v936
      %970 = vmatpush1.bf16.msra.mxu0 %v935
      %971 = vmatprep.subr.bf16.mxu0 0
      %972 = vmatpush2.bf16.msra.mxu0 0
      %973 = vmatprep.subr.bf16.mxu0 0
      %974 = vmatpush2.bf16.msra.mxu0 0
      %975 = vmatprep.subr.bf16.mxu0 0
      %976 = vmatpush2.bf16.msra.mxu0 0
      %977 = vmatprep.subr.bf16.mxu0 0
      %978 = vmatpush2.bf16.msra.mxu0 0
      %979 = vmatprep.subr.bf16.mxu0 0
      %980 = vmatpush2.bf16.msra.mxu0 0
      %981 = vmatprep.subr.bf16.mxu0 0
      %982 = vmatpush2.bf16.msra.mxu0 0
      %983 = vmatprep.subr.bf16.mxu0 0
      %984 = vmatpush2.bf16.msra.mxu0 0
      %985 = vmatprep.subr.bf16.mxu0 0
      %986 = vmatpush2.bf16.msra.mxu0 0
      %987 = vmatprep.mubr.bf16.mxu0 0
      %988 = vmatmul.mubr.bf16.gmra.mxu0 %v947
      %v989 = vpop.f32.mrf.mxu0
      %v990 = vadd.f32 %v909, %v989
      %v991 = vpop.f32.mrf.mxu0
      %v992 = vadd.f32 %v909, %v991
      %v993 = vpop.f32.mrf.mxu0
      %v994 = vpop.f32.mrf.mxu0
      %995 = vdwg.mxu0
      %v996 = vadd.f32 %v990, %v468
      %v997 = vadd.f32 %v992, %v470
      %v998 = vmax.f32 %v996, 0.0
      %v999 = vmax.f32 %v997, 0.0
      %v1002 = vcombine.low %v998, %v999
      %1004 = vst [vmem:[%s461] sm:$0xff] %v1002
      %s1005 = smul.u32 2, %s24
      %p1006 = scmp.lt.s32.totalorder %s23, 1
      %s1007 = scalar_select %p1006, %s23, 1
      %p1008 = scmp.lt.s32.totalorder %s1005, 1
      %s1009 = scalar_select %p1008, %s1005, 1
      %s1010 = smul.addr %s1007, 2
      %s1011 = sadd.s32 %s1009, %s1010
      %s1012 = smul.addr %s1011, 4
      %s1013 = scalar_lea.vmem %s8, %s1012
      // Predicated region
      $region53: #{aster_block_pallas.1} parent=51 // pred_check
        %p1014 = pneg %p256
      $region54: #{aster_block_pallas.1} parent=51 // pred_check_branch
        %1016 = sbr.rel (%p1014) target = $region56
      $region55: #{aster_block_pallas.1} parent=51 // pred_region
        %s1017 = smul.u32 2, %s24
      $region56: #{aster_block_pallas.1} parent=51 // pred_fallthru
        _
    $region52: #{aster_block_pallas.1} parent=5 // pred_fallthru
      _
    %p1018 = scmp.le.s32.totalorder 2, %s14
    // Predicated region
    $region57: #{aster_block_pallas.1} parent=5 // pred_check
      %p1019 = pneg %p1018
    $region58: #{aster_block_pallas.1} parent=5 // pred_check_branch
      %1021 = sbr.rel (%p1019) target = $region60
    $region59: #{aster_block_pallas.1} parent=5 // pred_region
      %s1022 = ssub.s32 %s14, 2
      // Predicated region
      $region61: #{aster_block_pallas.1} parent=59 // pred_check
        %p1023 = pneg %p262
      $region62: #{aster_block_pallas.1} parent=59 // pred_check_branch
        %1025 = sbr.rel (%p1023) target = $region64
      $region63: #{aster_block_pallas.1} parent=59 // pred_region
        %s1026 = smul.u32 2, %s26
        %p1027 = scmp.lt.s32.totalorder %s25, 1
        %s1028 = scalar_select %p1027, %s25, 1
        %p1029 = scmp.lt.s32.totalorder %s1026, 1
        %s1030 = scalar_select %p1029, %s1026, 1
        %s1031 = smul.addr %s1028, 2
        %s1032 = sadd.s32 %s1030, %s1031
        %s1033 = smul.addr %s1032, 4
        %s1034 = scalar_lea.vmem %s8, %s1033
      $region64: #{aster_block_pallas.1} parent=59 // pred_fallthru
        _
    $region60: #{aster_block_pallas.1} parent=5 // pred_fallthru
      _
  $region6: #{aster_block_pallas.1} parent=0 // loop_footer
    %s18 = sadd.s32 1, %s14
  $region7: #{aster_block_pallas.1} parent=0 // loop_footer_branch
    %13 = sbr.rel target = $region3
  $region8: #{aster_block_pallas.1} parent=0 // loop_exit
    _

</llo_original>
